<compile_context>
chip_gen: v5e
topology: v5e:2x2
jax: 0.10.0
libtpu: 0.0.40
codegen_flags: <defaults>
</compile_context>

<pallas_src>
import functools

import jax
import jax.numpy as jnp
from jax import lax
from jax.experimental import pallas as pl
from jax.experimental.pallas import tpu as pltpu

_BIG = 1e9      # "no edge anywhere" penalty (matches the brute-force reference)
_ROW_INF = 1e6  # per-row "no edge in this row" sentinel for the 1-D pass


def _softgbw_kernel(x_ref, l_ref, o_ref, *, sigma, ignore_index):
    # x_ref: (1, C, H, W) logits, l_ref: (1, H, W) int32, o_ref: (1, 1, 1) f32
    C = x_ref.shape[1]
    H = x_ref.shape[2]
    W = x_ref.shape[3]

    logits = x_ref[0].astype(jnp.float32)             # (C, H, W), cast in-kernel
    lab = l_ref[0]                                     # (H, W) int32

    ignore = lab == ignore_index                       # (H, W) bool
    tgt = jnp.where(ignore, 0, lab)                    # ignored pixels -> class 0

    # --- softmax stats over classes (shared by CE and argmax) ----------------
    m = jnp.max(logits, axis=0, keepdims=True)                          # (1,H,W)
    lse = m + jnp.log(jnp.sum(jnp.exp(logits - m), axis=0, keepdims=True))
    cls_idx = lax.broadcasted_iota(jnp.int32, (C, H, W), 0)
    logit_at = jnp.sum(jnp.where(cls_idx == tgt[None], logits, 0.0),
                       axis=0, keepdims=True)                           # (1,H,W)
    ce = jnp.where(ignore, 0.0, (lse - logit_at)[0])                    # (H,W)

    # --- argmax over classes: first maximal index, single pass reusing m -----
    pred = jnp.min(jnp.where(logits == m, cls_idx, C), axis=0)          # (H,W)
    pred = jnp.where(ignore, 0, pred)
    hard = tgt != pred                                                  # (H,W)

    # --- edge map: 4-neighbour boundary of target, plus hard pixels ----------
    col_i = lax.broadcasted_iota(jnp.int32, (H, W), 1)
    row_i = lax.broadcasted_iota(jnp.int32, (H, W), 0)
    h_valid = (col_i > 0) & (col_i < W - 1)
    v_valid = (row_i > 0) & (row_i < H - 1)
    edge_h = ((tgt != pltpu.roll(tgt, 1, axis=1)) |
              (tgt != pltpu.roll(tgt, W - 1, axis=1))) & h_valid
    edge_v = ((tgt != pltpu.roll(tgt, 1, axis=0)) |
              (tgt != pltpu.roll(tgt, H - 1, axis=0))) & v_valid
    edge = edge_h | edge_v | hard                                       # (H,W)

    # --- exact separable two-pass squared-L2 distance transform --------------
    # Pass 1 (horizontal): per-row distance (in columns) to the nearest edge
    # pixel, computed with a log-doubling one-sided min-plus scan in each
    # direction (exact because the input cost is binary 0 / INF).
    f = jnp.where(edge, 0.0, jnp.float32(_ROW_INF))                    # (H,W)

    dl = f                                 # nearest edge to the LEFT (<= c)
    s = 1
    while s < W:                           # static Python loop: ceil(log2 W) steps
        cand = pltpu.roll(dl, s, axis=1) + jnp.float32(s)
        dl = jnp.where(col_i >= s, jnp.minimum(dl, cand), dl)
        s *= 2

    dr = f                                 # nearest edge to the RIGHT (>= c)
    s = 1
    while s < W:
        cand = pltpu.roll(dr, W - s, axis=1) + jnp.float32(s)
        dr = jnp.where(col_i < W - s, jnp.minimum(dr, cand), dr)
        s *= 2

    d1 = jnp.minimum(dl, dr)               # (H,W) horizontal distance
    g = d1 * d1                            # squared; rows w/o edge ~ 1e12

    # Pass 2 (vertical): d2[r,c] = min_{r'} (r-r')^2 + g[r',c].
    # Carry a copy of g rotated up by one sublane per iteration (static-shift
    # roll, XLU) so source row r' is always statically addressable as row 0.
    row_sub = lax.broadcasted_iota(jnp.int32, (H, 1), 0).astype(jnp.float32)

    def _rows(rp, carry):
        d2, rolled = carry
        row_g = rolled[0:1, :]                               # (1,W) == g[rp]
        drf = row_sub - rp.astype(jnp.float32)               # (H,1)
        d2 = jnp.minimum(d2, row_g + drf * drf)
        rolled = pltpu.roll(rolled, H - 1, axis=0)           # advance to rp+1
        return (d2, rolled)

    dist2, _ = lax.fori_loop(0, H, _rows,
                             (jnp.full((H, W), _BIG, jnp.float32), g),
                             unroll=H <= 32)

    # --- gaussian heatmap weight, zeroed at ignore, weighted-CE reduction ----
    neg_inv_two_sigma2 = -1.0 / (2.0 * sigma * sigma)   # folded Python constant
    heat = 1.0 + jnp.exp(dist2 * neg_inv_two_sigma2)                    # (H,W)
    hm = jnp.where(ignore, 0.0, heat)                                   # (H,W)

    numer = jnp.sum(jnp.sum(ce * hm, axis=1, keepdims=True),
                    axis=0, keepdims=True)                              # (1,1)
    denom = jnp.sum(jnp.sum(hm, axis=1, keepdims=True),
                    axis=0, keepdims=True)                              # (1,1)
    o_ref[0] = numer / (denom + 1e-10)


def softgbw_loss(cls_score, label, *, sigma=7.0, loss_weight=1.0,
                 ignore_index=255):
    N, C, H, W = cls_score.shape
    # Keep logits in their input dtype (e.g. bf16) for the HBM->VMEM DMA;
    # the kernel upcasts to f32 after load.
    lab = label.astype(jnp.int32)

    per_img = pl.pallas_call(
        functools.partial(_softgbw_kernel, sigma=float(sigma),
                          ignore_index=ignore_index),
        out_shape=jax.ShapeDtypeStruct((N, 1, 1), jnp.float32),
        grid_spec=pltpu.PrefetchScalarGridSpec(
            num_scalar_prefetch=0,
            grid=(N,),
            in_specs=[
                pl.BlockSpec((1, C, H, W), lambda i: (i, 0, 0, 0)),
                pl.BlockSpec((1, H, W), lambda i: (i, 0, 0)),
            ],
            out_specs=pl.BlockSpec((1, 1, 1), lambda i: (i, 0, 0)),
        ),
        compiler_params=pltpu.CompilerParams(
            dimension_semantics=("parallel",),
            vmem_limit_bytes=32 * 1024 * 1024),
    )(cls_score, lab)

    return loss_weight * jnp.mean(per_img)


def _ref_softgbw_loss(cls_score, label, *, sigma=7.0, loss_weight=1.0,
                      ignore_index=255):
    """Pure-JAX reference of the same math (same Canny approximation)."""
    N, C, H, W = cls_score.shape
    x = cls_score.astype(jnp.float32)
    lab = label.astype(jnp.int32)
    col = jnp.arange(W)[None, :]
    row = jnp.arange(H)[:, None]
    P = H * W
    rowp = jnp.arange(P) // W
    colp = jnp.arange(P) % W
    losses = []
    for i in range(N):
        lg, lb = x[i], lab[i]
        ignore = lb == ignore_index
        tgt = jnp.where(ignore, 0, lb)
        pred = jnp.where(ignore, 0, jnp.argmax(lg, axis=0))
        hard = tgt != pred
        m = jnp.max(lg, axis=0)
        lse = m + jnp.log(jnp.sum(jnp.exp(lg - m[None]), axis=0))
        logit_at = jnp.take_along_axis(lg, tgt[None], axis=0)[0]
        ce = jnp.where(ignore, 0.0, lse - logit_at)
        h_valid = (col > 0) & (col < W - 1)
        v_valid = (row > 0) & (row < H - 1)
        edge_h = ((tgt != jnp.roll(tgt, 1, axis=1)) |
                  (tgt != jnp.roll(tgt, -1, axis=1))) & h_valid
        edge_v = ((tgt != jnp.roll(tgt, 1, axis=0)) |
                  (tgt != jnp.roll(tgt, -1, axis=0))) & v_valid
        edge = edge_h | edge_v | hard
        dr = rowp[:, None] - rowp[None, :]
        dc = colp[:, None] - colp[None, :]
        d2 = (dr * dr + dc * dc).astype(jnp.float32)
        pen = jnp.where(edge.reshape(-1), 0.0, _BIG)
        dist2 = jnp.min(d2 + pen[None, :], axis=1).reshape(H, W)
        heat = 1.0 + jnp.exp(-dist2 / (2.0 * sigma * sigma))
        hm = jnp.where(ignore, 0.0, heat)
        losses.append(jnp.sum(ce * hm) / (jnp.sum(hm) + 1e-10))
    return loss_weight * jnp.mean(jnp.stack(losses))


if __name__ == "__main__":
    key = jax.random.PRNGKey(0)
    N, C, H, W = 2, 4, 16, 16
    k1, k2, k3 = jax.random.split(key, 3)
    cls_score = jax.random.normal(k1, (N, C, H, W), jnp.float32)
    label = jax.random.randint(k2, (N, H, W), 0, C)
    ignore_mask = jax.random.uniform(k3, (N, H, W)) < 0.1
    label = jnp.where(ignore_mask, 255, label).astype(jnp.int32)

    out = softgbw_loss(cls_score, label, sigma=7.0, loss_weight=1.0)
    out = jax.block_until_ready(out)

    ref = _ref_softgbw_loss(cls_score, label, sigma=7.0, loss_weight=1.0)
    assert abs(float(out) - float(ref)) <= 1e-4 * max(1.0, abs(float(ref))), (
        float(out), float(ref))
    print("KERNEL_OK")
</pallas_src>

<mosaic_0001>
module attributes {stable_mosaic.version = 11 : i64} {
  func.func @_softgbw_kernel(%arg0: i32, %arg1: memref<1x4x16x16xf32, #tpu.memory_space<vmem>>, %arg2: memref<1x16x16xi32, #tpu.memory_space<vmem>>, %arg3: memref<1x1x1xf32, #tpu.memory_space<vmem>>) attributes {dimension_semantics = [#tpu.dimension_semantics<parallel>], iteration_bounds = array<i64: 2>, scalar_prefetch = 0 : i64, scratch_operands = 0 : i64, tpu.core_type = #tpu.core_type<tc>, window_params = [{transform_indices = @transform_0, window_bounds = array<i64: 1, 4, 16, 16>}, {transform_indices = @transform_1, window_bounds = array<i64: 1, 16, 16>}, {transform_indices = @transform_2, window_bounds = array<i64: 1, 1, 1>}]} {
    %c0 = arith.constant 0 : index
    %c0_0 = arith.constant 0 : index
    %c0_1 = arith.constant 0 : index
    %c0_2 = arith.constant 0 : index
    %0 = vector.load %arg1[%c0, %c0_0, %c0_1, %c0_2] : memref<1x4x16x16xf32, #tpu.memory_space<vmem>>, vector<1x4x16x16xf32>
    %1 = vector.shape_cast %0 : vector<1x4x16x16xf32> to vector<4x16x16xf32>
    %c0_3 = arith.constant 0 : index
    %c0_4 = arith.constant 0 : index
    %c0_5 = arith.constant 0 : index
    %2 = vector.load %arg2[%c0_3, %c0_4, %c0_5] : memref<1x16x16xi32, #tpu.memory_space<vmem>>, vector<1x16x16xi32>
    %3 = vector.shape_cast %2 : vector<1x16x16xi32> to vector<16x16xi32>
    %c255_i32 = arith.constant 255 : i32
    %4 = vector.broadcast %c255_i32 : i32 to vector<16x16xi32>
    %5 = arith.cmpi eq, %3, %4 : vector<16x16xi32>
    %c0_i32 = arith.constant 0 : i32
    %6 = vector.broadcast %c0_i32 : i32 to vector<16x16xi32>
    %7 = arith.select %5, %6, %3 : vector<16x16xi1>, vector<16x16xi32>
    %cst = arith.constant dense<0xFF800000> : vector<16x16xf32>
    %8 = vector.multi_reduction <maximumf>, %1, %cst [0] : vector<4x16x16xf32> to vector<16x16xf32>
    %9 = vector.shape_cast %8 : vector<16x16xf32> to vector<1x16x16xf32>
    %10 = vector.broadcast %9 : vector<1x16x16xf32> to vector<4x16x16xf32>
    %11 = arith.subf %1, %10 : vector<4x16x16xf32>
    %12 = math.exp %11 : vector<4x16x16xf32>
    %cst_6 = arith.constant dense<0.000000e+00> : vector<16x16xf32>
    %13 = vector.multi_reduction <add>, %12, %cst_6 [0] : vector<4x16x16xf32> to vector<16x16xf32>
    %14 = vector.shape_cast %13 : vector<16x16xf32> to vector<1x16x16xf32>
    %15 = math.log %14 : vector<1x16x16xf32>
    %16 = arith.addf %9, %15 : vector<1x16x16xf32>
    %17 = tpu.iota {dimensions = array<i32: 0>} : vector<4x16x16xi32>
    %18 = vector.shape_cast %7 : vector<16x16xi32> to vector<1x16x16xi32>
    %19 = vector.broadcast %18 : vector<1x16x16xi32> to vector<4x16x16xi32>
    %20 = arith.cmpi eq, %17, %19 : vector<4x16x16xi32>
    %cst_7 = arith.constant 0.000000e+00 : f32
    %21 = vector.broadcast %cst_7 : f32 to vector<4x16x16xf32>
    %22 = arith.select %20, %1, %21 : vector<4x16x16xi1>, vector<4x16x16xf32>
    %cst_8 = arith.constant dense<0.000000e+00> : vector<16x16xf32>
    %23 = vector.multi_reduction <add>, %22, %cst_8 [0] : vector<4x16x16xf32> to vector<16x16xf32>
    %24 = vector.shape_cast %23 : vector<16x16xf32> to vector<1x16x16xf32>
    %25 = arith.subf %16, %24 : vector<1x16x16xf32>
    %26 = vector.shape_cast %25 : vector<1x16x16xf32> to vector<16x16xf32>
    %cst_9 = arith.constant 0.000000e+00 : f32
    %27 = vector.broadcast %cst_9 : f32 to vector<16x16xf32>
    %28 = arith.select %5, %27, %26 : vector<16x16xi1>, vector<16x16xf32>
    %29 = vector.broadcast %9 : vector<1x16x16xf32> to vector<4x16x16xf32>
    %30 = arith.cmpf oeq, %1, %29 : vector<4x16x16xf32>
    %c4_i32 = arith.constant 4 : i32
    %31 = vector.broadcast %c4_i32 : i32 to vector<4x16x16xi32>
    %32 = arith.select %30, %17, %31 : vector<4x16x16xi1>, vector<4x16x16xi32>
    %cst_10 = arith.constant dense<2147483647> : vector<16x16xi32>
    %33 = vector.multi_reduction <minsi>, %32, %cst_10 [0] : vector<4x16x16xi32> to vector<16x16xi32>
    %c0_i32_11 = arith.constant 0 : i32
    %34 = vector.broadcast %c0_i32_11 : i32 to vector<16x16xi32>
    %35 = arith.select %5, %34, %33 : vector<16x16xi1>, vector<16x16xi32>
    %36 = arith.cmpi ne, %7, %35 : vector<16x16xi32>
    %37 = tpu.iota {dimensions = array<i32: 1>} : vector<16x16xi32>
    %38 = tpu.iota {dimensions = array<i32: 0>} : vector<16x16xi32>
    %c0_i32_12 = arith.constant 0 : i32
    %39 = vector.broadcast %c0_i32_12 : i32 to vector<16x16xi32>
    %40 = arith.cmpi sgt, %37, %39 : vector<16x16xi32>
    %c15_i32 = arith.constant 15 : i32
    %41 = vector.broadcast %c15_i32 : i32 to vector<16x16xi32>
    %42 = arith.cmpi slt, %37, %41 : vector<16x16xi32>
    %43 = arith.andi %40, %42 : vector<16x16xi1>
    %c0_i32_13 = arith.constant 0 : i32
    %44 = vector.broadcast %c0_i32_13 : i32 to vector<16x16xi32>
    %45 = arith.cmpi sgt, %38, %44 : vector<16x16xi32>
    %c15_i32_14 = arith.constant 15 : i32
    %46 = vector.broadcast %c15_i32_14 : i32 to vector<16x16xi32>
    %47 = arith.cmpi slt, %38, %46 : vector<16x16xi32>
    %48 = arith.andi %45, %47 : vector<16x16xi1>
    %c1_i32 = arith.constant 1 : i32
    %49 = tpu.dynamic_rotate %7 by %c1_i32 dim 1 : vector<16x16xi32>, i32 -> vector<16x16xi32>
    %50 = arith.cmpi ne, %7, %49 : vector<16x16xi32>
    %c15_i32_15 = arith.constant 15 : i32
    %51 = tpu.dynamic_rotate %7 by %c15_i32_15 dim 1 : vector<16x16xi32>, i32 -> vector<16x16xi32>
    %52 = arith.cmpi ne, %7, %51 : vector<16x16xi32>
    %53 = arith.ori %50, %52 : vector<16x16xi1>
    %54 = arith.andi %53, %43 : vector<16x16xi1>
    %c1_i32_16 = arith.constant 1 : i32
    %55 = tpu.dynamic_rotate %7 by %c1_i32_16 dim 0 : vector<16x16xi32>, i32 -> vector<16x16xi32>
    %56 = arith.cmpi ne, %7, %55 : vector<16x16xi32>
    %c15_i32_17 = arith.constant 15 : i32
    %57 = tpu.dynamic_rotate %7 by %c15_i32_17 dim 0 : vector<16x16xi32>, i32 -> vector<16x16xi32>
    %58 = arith.cmpi ne, %7, %57 : vector<16x16xi32>
    %59 = arith.ori %56, %58 : vector<16x16xi1>
    %60 = arith.andi %59, %48 : vector<16x16xi1>
    %61 = arith.ori %54, %60 : vector<16x16xi1>
    %62 = arith.ori %61, %36 : vector<16x16xi1>
    %cst_18 = arith.constant 0.000000e+00 : f32
    %cst_19 = arith.constant 1.000000e+06 : f32
    %63 = vector.broadcast %cst_18 : f32 to vector<16x16xf32>
    %64 = vector.broadcast %cst_19 : f32 to vector<16x16xf32>
    %65 = arith.select %62, %63, %64 : vector<16x16xi1>, vector<16x16xf32>
    %c1_i32_20 = arith.constant 1 : i32
    %66 = tpu.dynamic_rotate %65 by %c1_i32_20 dim 1 : vector<16x16xf32>, i32 -> vector<16x16xf32>
    %cst_21 = arith.constant 1.000000e+00 : f32
    %67 = vector.broadcast %cst_21 : f32 to vector<16x16xf32>
    %68 = arith.addf %66, %67 : vector<16x16xf32>
    %c1_i32_22 = arith.constant 1 : i32
    %69 = vector.broadcast %c1_i32_22 : i32 to vector<16x16xi32>
    %70 = arith.cmpi sge, %37, %69 : vector<16x16xi32>
    %71 = arith.minimumf %65, %68 : vector<16x16xf32>
    %72 = arith.select %70, %71, %65 : vector<16x16xi1>, vector<16x16xf32>
    %c2_i32 = arith.constant 2 : i32
    %73 = tpu.dynamic_rotate %72 by %c2_i32 dim 1 : vector<16x16xf32>, i32 -> vector<16x16xf32>
    %cst_23 = arith.constant 2.000000e+00 : f32
    %74 = vector.broadcast %cst_23 : f32 to vector<16x16xf32>
    %75 = arith.addf %73, %74 : vector<16x16xf32>
    %c2_i32_24 = arith.constant 2 : i32
    %76 = vector.broadcast %c2_i32_24 : i32 to vector<16x16xi32>
    %77 = arith.cmpi sge, %37, %76 : vector<16x16xi32>
    %78 = arith.minimumf %72, %75 : vector<16x16xf32>
    %79 = arith.select %77, %78, %72 : vector<16x16xi1>, vector<16x16xf32>
    %c4_i32_25 = arith.constant 4 : i32
    %80 = tpu.dynamic_rotate %79 by %c4_i32_25 dim 1 : vector<16x16xf32>, i32 -> vector<16x16xf32>
    %cst_26 = arith.constant 4.000000e+00 : f32
    %81 = vector.broadcast %cst_26 : f32 to vector<16x16xf32>
    %82 = arith.addf %80, %81 : vector<16x16xf32>
    %c4_i32_27 = arith.constant 4 : i32
    %83 = vector.broadcast %c4_i32_27 : i32 to vector<16x16xi32>
    %84 = arith.cmpi sge, %37, %83 : vector<16x16xi32>
    %85 = arith.minimumf %79, %82 : vector<16x16xf32>
    %86 = arith.select %84, %85, %79 : vector<16x16xi1>, vector<16x16xf32>
    %c8_i32 = arith.constant 8 : i32
    %87 = tpu.dynamic_rotate %86 by %c8_i32 dim 1 : vector<16x16xf32>, i32 -> vector<16x16xf32>
    %cst_28 = arith.constant 8.000000e+00 : f32
    %88 = vector.broadcast %cst_28 : f32 to vector<16x16xf32>
    %89 = arith.addf %87, %88 : vector<16x16xf32>
    %c8_i32_29 = arith.constant 8 : i32
    %90 = vector.broadcast %c8_i32_29 : i32 to vector<16x16xi32>
    %91 = arith.cmpi sge, %37, %90 : vector<16x16xi32>
    %92 = arith.minimumf %86, %89 : vector<16x16xf32>
    %93 = arith.select %91, %92, %86 : vector<16x16xi1>, vector<16x16xf32>
    %c15_i32_30 = arith.constant 15 : i32
    %94 = tpu.dynamic_rotate %65 by %c15_i32_30 dim 1 : vector<16x16xf32>, i32 -> vector<16x16xf32>
    %cst_31 = arith.constant 1.000000e+00 : f32
    %95 = vector.broadcast %cst_31 : f32 to vector<16x16xf32>
    %96 = arith.addf %94, %95 : vector<16x16xf32>
    %c15_i32_32 = arith.constant 15 : i32
    %97 = vector.broadcast %c15_i32_32 : i32 to vector<16x16xi32>
    %98 = arith.cmpi slt, %37, %97 : vector<16x16xi32>
    %99 = arith.minimumf %65, %96 : vector<16x16xf32>
    %100 = arith.select %98, %99, %65 : vector<16x16xi1>, vector<16x16xf32>
    %c14_i32 = arith.constant 14 : i32
    %101 = tpu.dynamic_rotate %100 by %c14_i32 dim 1 : vector<16x16xf32>, i32 -> vector<16x16xf32>
    %cst_33 = arith.constant 2.000000e+00 : f32
    %102 = vector.broadcast %cst_33 : f32 to vector<16x16xf32>
    %103 = arith.addf %101, %102 : vector<16x16xf32>
    %c14_i32_34 = arith.constant 14 : i32
    %104 = vector.broadcast %c14_i32_34 : i32 to vector<16x16xi32>
    %105 = arith.cmpi slt, %37, %104 : vector<16x16xi32>
    %106 = arith.minimumf %100, %103 : vector<16x16xf32>
    %107 = arith.select %105, %106, %100 : vector<16x16xi1>, vector<16x16xf32>
    %c12_i32 = arith.constant 12 : i32
    %108 = tpu.dynamic_rotate %107 by %c12_i32 dim 1 : vector<16x16xf32>, i32 -> vector<16x16xf32>
    %cst_35 = arith.constant 4.000000e+00 : f32
    %109 = vector.broadcast %cst_35 : f32 to vector<16x16xf32>
    %110 = arith.addf %108, %109 : vector<16x16xf32>
    %c12_i32_36 = arith.constant 12 : i32
    %111 = vector.broadcast %c12_i32_36 : i32 to vector<16x16xi32>
    %112 = arith.cmpi slt, %37, %111 : vector<16x16xi32>
    %113 = arith.minimumf %107, %110 : vector<16x16xf32>
    %114 = arith.select %112, %113, %107 : vector<16x16xi1>, vector<16x16xf32>
    %c8_i32_37 = arith.constant 8 : i32
    %115 = tpu.dynamic_rotate %114 by %c8_i32_37 dim 1 : vector<16x16xf32>, i32 -> vector<16x16xf32>
    %cst_38 = arith.constant 8.000000e+00 : f32
    %116 = vector.broadcast %cst_38 : f32 to vector<16x16xf32>
    %117 = arith.addf %115, %116 : vector<16x16xf32>
    %c8_i32_39 = arith.constant 8 : i32
    %118 = vector.broadcast %c8_i32_39 : i32 to vector<16x16xi32>
    %119 = arith.cmpi slt, %37, %118 : vector<16x16xi32>
    %120 = arith.minimumf %114, %117 : vector<16x16xf32>
    %121 = arith.select %119, %120, %114 : vector<16x16xi1>, vector<16x16xf32>
    %122 = arith.minimumf %93, %121 : vector<16x16xf32>
    %123 = arith.mulf %122, %122 : vector<16x16xf32>
    %124 = tpu.iota {dimensions = array<i32: 0>} : vector<16x1xi32>
    %125 = arith.sitofp %124 : vector<16x1xi32> to vector<16x1xf32>
    %cst_40 = arith.constant 1.000000e+09 : f32
    %126 = vector.broadcast %cst_40 : f32 to vector<16x16xf32>
    %c0_i32_41 = arith.constant 0 : i32
    %127 = vector.extract_strided_slice %123 {offsets = [0, 0], sizes = [1, 16], strides = [1, 1]} : vector<16x16xf32> to vector<1x16xf32>
    %128 = arith.sitofp %c0_i32_41 : i32 to f32
    %129 = vector.broadcast %128 : f32 to vector<16x1xf32>
    %130 = arith.subf %125, %129 : vector<16x1xf32>
    %131 = arith.mulf %130, %130 : vector<16x1xf32>
    %132 = vector.broadcast %127 : vector<1x16xf32> to vector<16x16xf32>
    %133 = vector.broadcast %131 : vector<16x1xf32> to vector<16x16xf32>
    %134 = arith.addf %132, %133 : vector<16x16xf32>
    %135 = arith.minimumf %126, %134 : vector<16x16xf32>
    %c15_i32_42 = arith.constant 15 : i32
    %136 = tpu.dynamic_rotate %123 by %c15_i32_42 dim 0 : vector<16x16xf32>, i32 -> vector<16x16xf32>
    %c1_i32_43 = arith.constant 1 : i32
    %137 = vector.extract_strided_slice %136 {offsets = [0, 0], sizes = [1, 16], strides = [1, 1]} : vector<16x16xf32> to vector<1x16xf32>
    %138 = arith.sitofp %c1_i32_43 : i32 to f32
    %139 = vector.broadcast %138 : f32 to vector<16x1xf32>
    %140 = arith.subf %125, %139 : vector<16x1xf32>
    %141 = arith.mulf %140, %140 : vector<16x1xf32>
    %142 = vector.broadcast %137 : vector<1x16xf32> to vector<16x16xf32>
    %143 = vector.broadcast %141 : vector<16x1xf32> to vector<16x16xf32>
    %144 = arith.addf %142, %143 : vector<16x16xf32>
    %145 = arith.minimumf %135, %144 : vector<16x16xf32>
    %c15_i32_44 = arith.constant 15 : i32
    %146 = tpu.dynamic_rotate %136 by %c15_i32_44 dim 0 : vector<16x16xf32>, i32 -> vector<16x16xf32>
    %c2_i32_45 = arith.constant 2 : i32
    %147 = vector.extract_strided_slice %146 {offsets = [0, 0], sizes = [1, 16], strides = [1, 1]} : vector<16x16xf32> to vector<1x16xf32>
    %148 = arith.sitofp %c2_i32_45 : i32 to f32
    %149 = vector.broadcast %148 : f32 to vector<16x1xf32>
    %150 = arith.subf %125, %149 : vector<16x1xf32>
    %151 = arith.mulf %150, %150 : vector<16x1xf32>
    %152 = vector.broadcast %147 : vector<1x16xf32> to vector<16x16xf32>
    %153 = vector.broadcast %151 : vector<16x1xf32> to vector<16x16xf32>
    %154 = arith.addf %152, %153 : vector<16x16xf32>
    %155 = arith.minimumf %145, %154 : vector<16x16xf32>
    %c15_i32_46 = arith.constant 15 : i32
    %156 = tpu.dynamic_rotate %146 by %c15_i32_46 dim 0 : vector<16x16xf32>, i32 -> vector<16x16xf32>
    %c3_i32 = arith.constant 3 : i32
    %157 = vector.extract_strided_slice %156 {offsets = [0, 0], sizes = [1, 16], strides = [1, 1]} : vector<16x16xf32> to vector<1x16xf32>
    %158 = arith.sitofp %c3_i32 : i32 to f32
    %159 = vector.broadcast %158 : f32 to vector<16x1xf32>
    %160 = arith.subf %125, %159 : vector<16x1xf32>
    %161 = arith.mulf %160, %160 : vector<16x1xf32>
    %162 = vector.broadcast %157 : vector<1x16xf32> to vector<16x16xf32>
    %163 = vector.broadcast %161 : vector<16x1xf32> to vector<16x16xf32>
    %164 = arith.addf %162, %163 : vector<16x16xf32>
    %165 = arith.minimumf %155, %164 : vector<16x16xf32>
    %c15_i32_47 = arith.constant 15 : i32
    %166 = tpu.dynamic_rotate %156 by %c15_i32_47 dim 0 : vector<16x16xf32>, i32 -> vector<16x16xf32>
    %c4_i32_48 = arith.constant 4 : i32
    %167 = vector.extract_strided_slice %166 {offsets = [0, 0], sizes = [1, 16], strides = [1, 1]} : vector<16x16xf32> to vector<1x16xf32>
    %168 = arith.sitofp %c4_i32_48 : i32 to f32
    %169 = vector.broadcast %168 : f32 to vector<16x1xf32>
    %170 = arith.subf %125, %169 : vector<16x1xf32>
    %171 = arith.mulf %170, %170 : vector<16x1xf32>
    %172 = vector.broadcast %167 : vector<1x16xf32> to vector<16x16xf32>
    %173 = vector.broadcast %171 : vector<16x1xf32> to vector<16x16xf32>
    %174 = arith.addf %172, %173 : vector<16x16xf32>
    %175 = arith.minimumf %165, %174 : vector<16x16xf32>
    %c15_i32_49 = arith.constant 15 : i32
    %176 = tpu.dynamic_rotate %166 by %c15_i32_49 dim 0 : vector<16x16xf32>, i32 -> vector<16x16xf32>
    %c5_i32 = arith.constant 5 : i32
    %177 = vector.extract_strided_slice %176 {offsets = [0, 0], sizes = [1, 16], strides = [1, 1]} : vector<16x16xf32> to vector<1x16xf32>
    %178 = arith.sitofp %c5_i32 : i32 to f32
    %179 = vector.broadcast %178 : f32 to vector<16x1xf32>
    %180 = arith.subf %125, %179 : vector<16x1xf32>
    %181 = arith.mulf %180, %180 : vector<16x1xf32>
    %182 = vector.broadcast %177 : vector<1x16xf32> to vector<16x16xf32>
    %183 = vector.broadcast %181 : vector<16x1xf32> to vector<16x16xf32>
    %184 = arith.addf %182, %183 : vector<16x16xf32>
    %185 = arith.minimumf %175, %184 : vector<16x16xf32>
    %c15_i32_50 = arith.constant 15 : i32
    %186 = tpu.dynamic_rotate %176 by %c15_i32_50 dim 0 : vector<16x16xf32>, i32 -> vector<16x16xf32>
    %c6_i32 = arith.constant 6 : i32
    %187 = vector.extract_strided_slice %186 {offsets = [0, 0], sizes = [1, 16], strides = [1, 1]} : vector<16x16xf32> to vector<1x16xf32>
    %188 = arith.sitofp %c6_i32 : i32 to f32
    %189 = vector.broadcast %188 : f32 to vector<16x1xf32>
    %190 = arith.subf %125, %189 : vector<16x1xf32>
    %191 = arith.mulf %190, %190 : vector<16x1xf32>
    %192 = vector.broadcast %187 : vector<1x16xf32> to vector<16x16xf32>
    %193 = vector.broadcast %191 : vector<16x1xf32> to vector<16x16xf32>
    %194 = arith.addf %192, %193 : vector<16x16xf32>
    %195 = arith.minimumf %185, %194 : vector<16x16xf32>
    %c15_i32_51 = arith.constant 15 : i32
    %196 = tpu.dynamic_rotate %186 by %c15_i32_51 dim 0 : vector<16x16xf32>, i32 -> vector<16x16xf32>
    %c7_i32 = arith.constant 7 : i32
    %197 = vector.extract_strided_slice %196 {offsets = [0, 0], sizes = [1, 16], strides = [1, 1]} : vector<16x16xf32> to vector<1x16xf32>
    %198 = arith.sitofp %c7_i32 : i32 to f32
    %199 = vector.broadcast %198 : f32 to vector<16x1xf32>
    %200 = arith.subf %125, %199 : vector<16x1xf32>
    %201 = arith.mulf %200, %200 : vector<16x1xf32>
    %202 = vector.broadcast %197 : vector<1x16xf32> to vector<16x16xf32>
    %203 = vector.broadcast %201 : vector<16x1xf32> to vector<16x16xf32>
    %204 = arith.addf %202, %203 : vector<16x16xf32>
    %205 = arith.minimumf %195, %204 : vector<16x16xf32>
    %c15_i32_52 = arith.constant 15 : i32
    %206 = tpu.dynamic_rotate %196 by %c15_i32_52 dim 0 : vector<16x16xf32>, i32 -> vector<16x16xf32>
    %c8_i32_53 = arith.constant 8 : i32
    %207 = vector.extract_strided_slice %206 {offsets = [0, 0], sizes = [1, 16], strides = [1, 1]} : vector<16x16xf32> to vector<1x16xf32>
    %208 = arith.sitofp %c8_i32_53 : i32 to f32
    %209 = vector.broadcast %208 : f32 to vector<16x1xf32>
    %210 = arith.subf %125, %209 : vector<16x1xf32>
    %211 = arith.mulf %210, %210 : vector<16x1xf32>
    %212 = vector.broadcast %207 : vector<1x16xf32> to vector<16x16xf32>
    %213 = vector.broadcast %211 : vector<16x1xf32> to vector<16x16xf32>
    %214 = arith.addf %212, %213 : vector<16x16xf32>
    %215 = arith.minimumf %205, %214 : vector<16x16xf32>
    %c15_i32_54 = arith.constant 15 : i32
    %216 = tpu.dynamic_rotate %206 by %c15_i32_54 dim 0 : vector<16x16xf32>, i32 -> vector<16x16xf32>
    %c9_i32 = arith.constant 9 : i32
    %217 = vector.extract_strided_slice %216 {offsets = [0, 0], sizes = [1, 16], strides = [1, 1]} : vector<16x16xf32> to vector<1x16xf32>
    %218 = arith.sitofp %c9_i32 : i32 to f32
    %219 = vector.broadcast %218 : f32 to vector<16x1xf32>
    %220 = arith.subf %125, %219 : vector<16x1xf32>
    %221 = arith.mulf %220, %220 : vector<16x1xf32>
    %222 = vector.broadcast %217 : vector<1x16xf32> to vector<16x16xf32>
    %223 = vector.broadcast %221 : vector<16x1xf32> to vector<16x16xf32>
    %224 = arith.addf %222, %223 : vector<16x16xf32>
    %225 = arith.minimumf %215, %224 : vector<16x16xf32>
    %c15_i32_55 = arith.constant 15 : i32
    %226 = tpu.dynamic_rotate %216 by %c15_i32_55 dim 0 : vector<16x16xf32>, i32 -> vector<16x16xf32>
    %c10_i32 = arith.constant 10 : i32
    %227 = vector.extract_strided_slice %226 {offsets = [0, 0], sizes = [1, 16], strides = [1, 1]} : vector<16x16xf32> to vector<1x16xf32>
    %228 = arith.sitofp %c10_i32 : i32 to f32
    %229 = vector.broadcast %228 : f32 to vector<16x1xf32>
    %230 = arith.subf %125, %229 : vector<16x1xf32>
    %231 = arith.mulf %230, %230 : vector<16x1xf32>
    %232 = vector.broadcast %227 : vector<1x16xf32> to vector<16x16xf32>
    %233 = vector.broadcast %231 : vector<16x1xf32> to vector<16x16xf32>
    %234 = arith.addf %232, %233 : vector<16x16xf32>
    %235 = arith.minimumf %225, %234 : vector<16x16xf32>
    %c15_i32_56 = arith.constant 15 : i32
    %236 = tpu.dynamic_rotate %226 by %c15_i32_56 dim 0 : vector<16x16xf32>, i32 -> vector<16x16xf32>
    %c11_i32 = arith.constant 11 : i32
    %237 = vector.extract_strided_slice %236 {offsets = [0, 0], sizes = [1, 16], strides = [1, 1]} : vector<16x16xf32> to vector<1x16xf32>
    %238 = arith.sitofp %c11_i32 : i32 to f32
    %239 = vector.broadcast %238 : f32 to vector<16x1xf32>
    %240 = arith.subf %125, %239 : vector<16x1xf32>
    %241 = arith.mulf %240, %240 : vector<16x1xf32>
    %242 = vector.broadcast %237 : vector<1x16xf32> to vector<16x16xf32>
    %243 = vector.broadcast %241 : vector<16x1xf32> to vector<16x16xf32>
    %244 = arith.addf %242, %243 : vector<16x16xf32>
    %245 = arith.minimumf %235, %244 : vector<16x16xf32>
    %c15_i32_57 = arith.constant 15 : i32
    %246 = tpu.dynamic_rotate %236 by %c15_i32_57 dim 0 : vector<16x16xf32>, i32 -> vector<16x16xf32>
    %c12_i32_58 = arith.constant 12 : i32
    %247 = vector.extract_strided_slice %246 {offsets = [0, 0], sizes = [1, 16], strides = [1, 1]} : vector<16x16xf32> to vector<1x16xf32>
    %248 = arith.sitofp %c12_i32_58 : i32 to f32
    %249 = vector.broadcast %248 : f32 to vector<16x1xf32>
    %250 = arith.subf %125, %249 : vector<16x1xf32>
    %251 = arith.mulf %250, %250 : vector<16x1xf32>
    %252 = vector.broadcast %247 : vector<1x16xf32> to vector<16x16xf32>
    %253 = vector.broadcast %251 : vector<16x1xf32> to vector<16x16xf32>
    %254 = arith.addf %252, %253 : vector<16x16xf32>
    %255 = arith.minimumf %245, %254 : vector<16x16xf32>
    %c15_i32_59 = arith.constant 15 : i32
    %256 = tpu.dynamic_rotate %246 by %c15_i32_59 dim 0 : vector<16x16xf32>, i32 -> vector<16x16xf32>
    %c13_i32 = arith.constant 13 : i32
    %257 = vector.extract_strided_slice %256 {offsets = [0, 0], sizes = [1, 16], strides = [1, 1]} : vector<16x16xf32> to vector<1x16xf32>
    %258 = arith.sitofp %c13_i32 : i32 to f32
    %259 = vector.broadcast %258 : f32 to vector<16x1xf32>
    %260 = arith.subf %125, %259 : vector<16x1xf32>
    %261 = arith.mulf %260, %260 : vector<16x1xf32>
    %262 = vector.broadcast %257 : vector<1x16xf32> to vector<16x16xf32>
    %263 = vector.broadcast %261 : vector<16x1xf32> to vector<16x16xf32>
    %264 = arith.addf %262, %263 : vector<16x16xf32>
    %265 = arith.minimumf %255, %264 : vector<16x16xf32>
    %c15_i32_60 = arith.constant 15 : i32
    %266 = tpu.dynamic_rotate %256 by %c15_i32_60 dim 0 : vector<16x16xf32>, i32 -> vector<16x16xf32>
    %c14_i32_61 = arith.constant 14 : i32
    %267 = vector.extract_strided_slice %266 {offsets = [0, 0], sizes = [1, 16], strides = [1, 1]} : vector<16x16xf32> to vector<1x16xf32>
    %268 = arith.sitofp %c14_i32_61 : i32 to f32
    %269 = vector.broadcast %268 : f32 to vector<16x1xf32>
    %270 = arith.subf %125, %269 : vector<16x1xf32>
    %271 = arith.mulf %270, %270 : vector<16x1xf32>
    %272 = vector.broadcast %267 : vector<1x16xf32> to vector<16x16xf32>
    %273 = vector.broadcast %271 : vector<16x1xf32> to vector<16x16xf32>
    %274 = arith.addf %272, %273 : vector<16x16xf32>
    %275 = arith.minimumf %265, %274 : vector<16x16xf32>
    %c15_i32_62 = arith.constant 15 : i32
    %276 = tpu.dynamic_rotate %266 by %c15_i32_62 dim 0 : vector<16x16xf32>, i32 -> vector<16x16xf32>
    %c15_i32_63 = arith.constant 15 : i32
    %277 = vector.extract_strided_slice %276 {offsets = [0, 0], sizes = [1, 16], strides = [1, 1]} : vector<16x16xf32> to vector<1x16xf32>
    %278 = arith.sitofp %c15_i32_63 : i32 to f32
    %279 = vector.broadcast %278 : f32 to vector<16x1xf32>
    %280 = arith.subf %125, %279 : vector<16x1xf32>
    %281 = arith.mulf %280, %280 : vector<16x1xf32>
    %282 = vector.broadcast %277 : vector<1x16xf32> to vector<16x16xf32>
    %283 = vector.broadcast %281 : vector<16x1xf32> to vector<16x16xf32>
    %284 = arith.addf %282, %283 : vector<16x16xf32>
    %285 = arith.minimumf %275, %284 : vector<16x16xf32>
    %c15_i32_64 = arith.constant 15 : i32
    %286 = tpu.dynamic_rotate %276 by %c15_i32_64 dim 0 : vector<16x16xf32>, i32 -> vector<16x16xf32>
    %c16_i32 = arith.constant 16 : i32
    %cst_65 = arith.constant -0.0102040814 : f32
    %287 = vector.broadcast %cst_65 : f32 to vector<16x16xf32>
    %288 = arith.mulf %285, %287 : vector<16x16xf32>
    %289 = math.exp %288 : vector<16x16xf32>
    %cst_66 = arith.constant 1.000000e+00 : f32
    %290 = vector.broadcast %cst_66 : f32 to vector<16x16xf32>
    %291 = arith.addf %290, %289 : vector<16x16xf32>
    %cst_67 = arith.constant 0.000000e+00 : f32
    %292 = vector.broadcast %cst_67 : f32 to vector<16x16xf32>
    %293 = arith.select %5, %292, %291 : vector<16x16xi1>, vector<16x16xf32>
    %294 = arith.mulf %28, %293 : vector<16x16xf32>
    %cst_68 = arith.constant dense<0.000000e+00> : vector<16xf32>
    %295 = vector.multi_reduction <add>, %294, %cst_68 [1] : vector<16x16xf32> to vector<16xf32>
    %296 = vector.shape_cast %295 : vector<16xf32> to vector<16x1xf32>
    %cst_69 = arith.constant dense<0.000000e+00> : vector<1xf32>
    %297 = vector.multi_reduction <add>, %296, %cst_69 [0] : vector<16x1xf32> to vector<1xf32>
    %298 = vector.shape_cast %297 : vector<1xf32> to vector<1x1xf32>
    %cst_70 = arith.constant dense<0.000000e+00> : vector<16xf32>
    %299 = vector.multi_reduction <add>, %293, %cst_70 [1] : vector<16x16xf32> to vector<16xf32>
    %300 = vector.shape_cast %299 : vector<16xf32> to vector<16x1xf32>
    %cst_71 = arith.constant dense<0.000000e+00> : vector<1xf32>
    %301 = vector.multi_reduction <add>, %300, %cst_71 [0] : vector<16x1xf32> to vector<1xf32>
    %302 = vector.shape_cast %301 : vector<1xf32> to vector<1x1xf32>
    %cst_72 = arith.constant 1.000000e-10 : f32
    %303 = vector.broadcast %cst_72 : f32 to vector<1x1xf32>
    %304 = arith.addf %302, %303 : vector<1x1xf32>
    %305 = arith.divf %298, %304 : vector<1x1xf32>
    %c0_73 = arith.constant 0 : index
    %c0_74 = arith.constant 0 : index
    %c0_75 = arith.constant 0 : index
    %306 = vector.load %arg3[%c0_73, %c0_74, %c0_75] : memref<1x1x1xf32, #tpu.memory_space<vmem>>, vector<1x1x1xf32>
    %307 = vector.shape_cast %306 : vector<1x1x1xf32> to vector<1x1xf32>
    %308 = vector.shape_cast %305 : vector<1x1xf32> to vector<1x1x1xf32>
    tpu.vector_store %arg3[%c0_73, %c0_74, %c0_75], %308 {strides = array<i32>} : memref<1x1x1xf32, #tpu.memory_space<vmem>>, vector<1x1x1xf32>,
    return
  }
  func.func @transform_0(%arg0: i32) -> (i32, i32, i32, i32) {
    %c0_i32 = arith.constant 0 : i32
    %c0_i32_0 = arith.constant 0 : i32
    %c0_i32_1 = arith.constant 0 : i32
    %c0_i32_2 = arith.constant 0 : i32
    return %arg0, %c0_i32, %c0_i32_0, %c0_i32_1 : i32, i32, i32, i32
  }
  func.func @transform_1(%arg0: i32) -> (i32, i32, i32) {
    %c0_i32 = arith.constant 0 : i32
    %c0_i32_0 = arith.constant 0 : i32
    %c0_i32_1 = arith.constant 0 : i32
    return %arg0, %c0_i32, %c0_i32_0 : i32, i32, i32
  }
  func.func @transform_2(%arg0: i32) -> (i32, i32, i32) {
    %c0_i32 = arith.constant 0 : i32
    %c0_i32_0 = arith.constant 0 : i32
    %c0_i32_1 = arith.constant 0 : i32
    return %arg0, %c0_i32, %c0_i32_0 : i32, i32, i32
  }
}

</mosaic_0001>

<llo_original>
// kernel: tpu_custom_call.1
$region0: #{tpu_custom_call.1}
  #allocation0 [shape = 'u32[]', space=smem, size = 0x4, offset = 0x4, fixed_abs, tag = 'smem constant byte address 0x4 - core index']
  #allocation1 [shape = 'u32[72,128]{1,0:T(1,128)}', space=vmem, size = 0x9000, scoped, tag = 'internal scratch']
  %s0 = inlined_call_operand.hbm [shape: f32[2,4,16,16], index: 0, kind: input, shape index: {}]
  %s1 = inlined_call_operand.hbm [shape: s32[2,16,16], index: 1, kind: input, shape index: {}]
  %s2 = inlined_call_operand.vmem [shape: f32[2,1,1], index: 2, kind: output, shape index: {}]
  %s3 = sld [smem:[#allocation0]]
  $region49: #{tpu_custom_call.1} parent=0
    _
  %s5 = ssub.s32 1, %s3
  %s6 = scalar_select 0, %s5, %s3
  $region1: #{tpu_custom_call.1} parent=0
    #allocation2 [shape = 'u8[65536]{0}', space=vmem, size = 0x10000, scoped, tag = 'input window, operand 0']
    #allocation3 [shape = 's32[2]{0}', space=sflag, size = 0x8, scoped, tag = 'scoped memory for tpu_custom_call.1']
    #allocation4 [shape = 'u8[16384]{0}', space=vmem, size = 0x4000, scoped, tag = 'input window, operand 1']
    #allocation5 [shape = 's32[2]{0}', space=sflag, size = 0x8, scoped, tag = 'scoped memory for tpu_custom_call.1']
    %7 = vsyncpa [#allocation3], 0
    %s8 = scalar_lea.sflag [#allocation3], 1
    %9 = vsyncpa %s8, 0
    %10 = vsyncpa [#allocation5], 0
    %s11 = scalar_lea.sflag [#allocation5], 1
    %12 = vsyncpa %s11, 0
    loop: start=0, step=1, limit=4
    $region2: #{tpu_custom_call.1} parent=1 // loop_pre_header
      _
    $region3: #{tpu_custom_call.1} parent=1 // loop_header
      %s14 = sphi 0, %s18
      %p15 = scmp.ge.s32.totalorder %s14, 4
      %s24 = sphi 0, %s26
      %s27 = sphi 0, %s24
      %s28 = sphi 0, %s27
      %s44 = sphi 0, %s28
      %s50 = sphi 0, %s52
      %s53 = sphi 0, %s50
      %s54 = sphi 0, %s53
      %s70 = sphi 0, %s54
      %s76 = sphi 0, %s78
      %s79 = sphi 0, %s76
      %s80 = sphi 0, %s79
      %s96 = sphi 0, %s80
    $region4: #{tpu_custom_call.1} parent=1 // loop_header_branch
      %17 = sbr.rel (%p15) target = $region8
    $region5: #{tpu_custom_call.1} parent=1 // loop_body
      %s19 = ssub.s32 %s14, 1
      %s20 = ssub.s32 %s14, 2
      %s21 = sadd.s32 %s14, 1
      %s22 = ssub.s32 %s14, %s21
      %p23 = scmp.eq.s32.totalorder %s22, 0
      %s25 = sadd.s32 %s24, 1
      %s26 = scalar_select %p23, %s24, %s25
      %p29 = pneg %p23
      %p30 = scmp.eq.s32.totalorder %s14, 1
      %p31 = por %p29, %p30
      %p32 = scmp.ne.s32.totalorder %s24, %s27
      %p33 = scmp.eq.s32.totalorder %s14, 0
      %p34 = por %p32, %p33
      %p35 = scmp.ne.s32.totalorder %s24, %s27
      %p36 = scmp.eq.s32.totalorder %s19, 1
      %p37 = por %p35, %p36
      %p38 = scmp.ne.s32.totalorder %s27, %s28
      %p39 = scmp.eq.s32.totalorder %s19, 0
      %p40 = por %p38, %p39
      %p41 = scmp.ne.s32.totalorder %s27, %s28
      %p42 = scmp.eq.s32.totalorder %s20, 1
      %p43 = por %p41, %p42
      %p45 = scmp.ne.s32.totalorder %s28, %s44
      %p46 = scmp.eq.s32.totalorder %s20, 0
      %p47 = por %p45, %p46
      %s48 = ssub.s32 %s14, %s21
      %p49 = scmp.eq.s32.totalorder %s48, 0
      %s51 = sadd.s32 %s50, 1
      %s52 = scalar_select %p49, %s50, %s51
      %p55 = pneg %p49
      %p56 = scmp.eq.s32.totalorder %s14, 1
      %p57 = por %p55, %p56
      %p58 = scmp.ne.s32.totalorder %s50, %s53
      %p59 = scmp.eq.s32.totalorder %s14, 0
      %p60 = por %p58, %p59
      %p61 = scmp.ne.s32.totalorder %s50, %s53
      %p62 = scmp.eq.s32.totalorder %s19, 1
      %p63 = por %p61, %p62
      %p64 = scmp.ne.s32.totalorder %s53, %s54
      %p65 = scmp.eq.s32.totalorder %s19, 0
      %p66 = por %p64, %p65
      %p67 = scmp.ne.s32.totalorder %s53, %s54
      %p68 = scmp.eq.s32.totalorder %s20, 1
      %p69 = por %p67, %p68
      %p71 = scmp.ne.s32.totalorder %s54, %s70
      %p72 = scmp.eq.s32.totalorder %s20, 0
      %p73 = por %p71, %p72
      %s74 = ssub.s32 %s14, %s21
      %p75 = scmp.eq.s32.totalorder %s74, 0
      %s77 = sadd.s32 %s76, 1
      %s78 = scalar_select %p75, %s76, %s77
      %p81 = pneg %p75
      %p82 = scmp.eq.s32.totalorder %s14, 1
      %p83 = por %p81, %p82
      %p84 = scmp.ne.s32.totalorder %s76, %s79
      %p85 = scmp.eq.s32.totalorder %s14, 0
      %p86 = por %p84, %p85
      %p87 = scmp.ne.s32.totalorder %s76, %s79
      %p88 = scmp.eq.s32.totalorder %s19, 1
      %p89 = por %p87, %p88
      %p90 = scmp.ne.s32.totalorder %s79, %s80
      %p91 = scmp.eq.s32.totalorder %s19, 0
      %p92 = por %p90, %p91
      %p93 = scmp.ne.s32.totalorder %s79, %s80
      %p94 = scmp.eq.s32.totalorder %s20, 1
      %p95 = por %p93, %p94
      %p97 = scmp.ne.s32.totalorder %s80, %s96
      %p98 = scmp.eq.s32.totalorder %s20, 0
      %p99 = por %p97, %p98
      %p100 = scmp.le.s32.totalorder 1, %s14
      %p101 = scmp.lt.s32.totalorder %s14, 3
      %p102 = pnand %p100, %p101
      %p103 = pneg %p102
      // Predicated region
      $region9: #{tpu_custom_call.1} parent=5 // pred_check
        _
      $region10: #{tpu_custom_call.1} parent=5 // pred_check_branch
        %105 = sbr.rel (%p102) target = $region12
      $region11: #{tpu_custom_call.1} parent=5 // pred_region
        %s106 = ssub.s32 %s14, 1
      $region12: #{tpu_custom_call.1} parent=5 // pred_fallthru
        _
      %p107 = scmp.lt.s32.totalorder %s14, 2
      // Predicated region
      $region13: #{tpu_custom_call.1} parent=5 // pred_check
        %p108 = pneg %p107
      $region14: #{tpu_custom_call.1} parent=5 // pred_check_branch
        %110 = sbr.rel (%p108) target = $region16
      $region15: #{tpu_custom_call.1} parent=5 // pred_region
        // Predicated region
        $region17: #{tpu_custom_call.1} parent=15 // pred_check
          %p111 = pneg %p34
        $region18: #{tpu_custom_call.1} parent=15 // pred_check_branch
          %113 = sbr.rel (%p111) target = $region20
        $region19: #{tpu_custom_call.1} parent=15 // pred_region
          %s114 = sand.u32 %s24, 1
          %s115 = scalar_lea.sflag [#allocation3], %s114
          %s116 = sand.u32 %s24, 1
          %s117 = smul.addr %s116, 64
          %s118 = scalar_lea.vmem [#allocation2], %s117
          %120 = vsyncadd %s115, 0
          %s121 = smul.addr %s14, 8
          %s122 = smul.addr %s121, 8
          %s123 = scalar_lea.hbm %s0, %s122
          %s124 = sshll.u32 %s123, 4
          %s125 = int_to_ptr.hbm [resolvable:$true] %s124
          %s126 = sshll.u32 %s118, 4
          %s127 = int_to_ptr.vmem [resolvable:$true] %s126
          %132 = dma.hbm_to_vmem [thread:$0]  %s125, 1024, %s127, %s115, 128, 128, 8
        $region20: #{tpu_custom_call.1} parent=15 // pred_fallthru
          _
        // Predicated region
        $region21: #{tpu_custom_call.1} parent=15 // pred_check
          %p133 = pneg %p60
        $region22: #{tpu_custom_call.1} parent=15 // pred_check_branch
          %135 = sbr.rel (%p133) target = $region24
        $region23: #{tpu_custom_call.1} parent=15 // pred_region
          %s136 = sand.u32 %s50, 1
          %s137 = scalar_lea.sflag [#allocation5], %s136
          %s138 = sand.u32 %s50, 1
          %s139 = smul.addr %s138, 16
          %s140 = scalar_lea.vmem [#allocation4], %s139
          %142 = vsyncadd %s137, 0
          %s143 = smul.addr %s14, 2
          %s144 = smul.addr %s143, 8
          %s145 = scalar_lea.hbm %s1, %s144
          %s146 = sshll.u32 %s145, 4
          %s147 = int_to_ptr.hbm [resolvable:$true] %s146
          %s148 = sshll.u32 %s140, 4
          %s149 = int_to_ptr.vmem [resolvable:$true] %s148
          %154 = dma.hbm_to_vmem [thread:$0]  %s147, 256, %s149, %s137, 128, 128, 8
        $region24: #{tpu_custom_call.1} parent=15 // pred_fallthru
          _
      $region16: #{tpu_custom_call.1} parent=5 // pred_fallthru
        _
      %p155 = scmp.le.s32.totalorder 1, %s14
      %p156 = scmp.lt.s32.totalorder %s14, 3
      %p157 = pnand %p155, %p156
      %p158 = pneg %p157
      // Predicated region
      $region25: #{tpu_custom_call.1} parent=5 // pred_check
        _
      $region26: #{tpu_custom_call.1} parent=5 // pred_check_branch
        %160 = sbr.rel (%p157) target = $region28
      $region27: #{tpu_custom_call.1} parent=5 // pred_region
        %s161 = ssub.s32 %s14, 1
        %s162 = sand.u32 %s27, 1
        %s163 = scalar_lea.sflag [#allocation3], %s162
        %s164 = sand.u32 %s27, 1
        %s165 = smul.addr %s164, 64
        %s166 = scalar_lea.vmem [#allocation2], %s165
        // Predicated region
        $region29: #{tpu_custom_call.1} parent=27 // pred_check
          %p167 = pneg %p40
        $region30: #{tpu_custom_call.1} parent=27 // pred_check_branch
          %169 = sbr.rel (%p167) target = $region32
        $region31: #{tpu_custom_call.1} parent=27 // pred_region
          %171 = dma.done %s163, 1024
        $region32: #{tpu_custom_call.1} parent=27 // pred_fallthru
          _
        %s172 = sand.u32 %s53, 1
        %s173 = scalar_lea.sflag [#allocation5], %s172
        %s174 = sand.u32 %s53, 1
        %s175 = smul.addr %s174, 16
        %s176 = scalar_lea.vmem [#allocation4], %s175
        // Predicated region
        $region33: #{tpu_custom_call.1} parent=27 // pred_check
          %p177 = pneg %p66
        $region34: #{tpu_custom_call.1} parent=27 // pred_check_branch
          %179 = sbr.rel (%p177) target = $region36
        $region35: #{tpu_custom_call.1} parent=27 // pred_region
          %181 = dma.done %s173, 256
        $region36: #{tpu_custom_call.1} parent=27 // pred_fallthru
          _
        %s182 = sand.u32 %s27, 1
        %s183 = scalar_lea.sflag [#allocation3], %s182
        %s184 = sand.u32 %s27, 1
        %s185 = smul.addr %s184, 64
        %s186 = scalar_lea.vmem [#allocation2], %s185
        %p187 = pneg %p40
        %p188 = pneg %p37
        %s189 = sand.u32 %s53, 1
        %s190 = scalar_lea.sflag [#allocation5], %s189
        %s191 = sand.u32 %s53, 1
        %s192 = smul.addr %s191, 16
        %s193 = scalar_lea.vmem [#allocation4], %s192
        %p194 = pneg %p66
        %p195 = pneg %p63
        %p196 = pneg %p92
        %p197 = pneg %p89
        %p198 = scmp.lt.s32.totalorder %s19, 1
        %s199 = scalar_select %p198, %s19, 1
        %s200 = scalar_lea.vmem %s2, %s199
        %p201 = scmp.lt.s32.totalorder %s19, 1
        %s202 = scalar_select %p201, %s19, 1
        %s203 = scalar_lea.vmem %s2, %s202
        %v204 = vld [vmem:[%s166] sm:$0xff]
        %v205 = vld [vmem:[%s166 + $0x8] sm:$0xff]
        %v206 = vld [vmem:[%s166 + $0x10] sm:$0xff]
        %v207 = vld [vmem:[%s166 + $0x18] sm:$0xff]
        %v208 = vld [vmem:[%s166 + $0x20] sm:$0xff]
        %v209 = vld [vmem:[%s166 + $0x28] sm:$0xff]
        %v210 = vld [vmem:[%s166 + $0x30] sm:$0xff]
        %v211 = vld [vmem:[%s166 + $0x38] sm:$0xff]
        %v212 = vld [vmem:[%s176] sm:$0xff]
        %v213 = vld [vmem:[%s176 + $0x8] sm:$0xff]
        %vm214 = vcmp.eq.s32.totalorder %v212, 255
        %vm215 = vcmp.eq.s32.totalorder %v213, 255
        %v216 = vsel %vm214, 0, %v212
        %v217 = vsel %vm215, 0, %v213
        %vm218 = vcmask 130048
        %v219 = vsel %vm218, %v204, -inf
        %v220 = vsel %vm218, %v206, -inf
        %v221 = vsel %vm218, %v208, -inf
        %v222 = vmax.f32 %v219, %v221
        %v223 = vsel %vm218, %v210, -inf
        %v224 = vmax.f32 %v220, %v223
        %v225 = vmax.f32 %v222, %v224
        %v226 = vsel %vm218, %v205, -inf
        %v227 = vsel %vm218, %v207, -inf
        %v228 = vsel %vm218, %v209, -inf
        %v229 = vmax.f32 %v226, %v228
        %v230 = vsel %vm218, %v211, -inf
        %v231 = vmax.f32 %v227, %v230
        %v232 = vmax.f32 %v229, %v231
        %v233 = vsub.f32 %v204, %v225
        %v234 = vsub.f32 %v205, %v232
        %v235 = vsub.f32 %v206, %v225
        %v236 = vsub.f32 %v207, %v232
        %v237 = vsub.f32 %v208, %v225
        %v238 = vsub.f32 %v209, %v232
        %v239 = vsub.f32 %v210, %v225
        %v240 = vsub.f32 %v211, %v232
        %v241 = vmul.f32 %v233, 1.442695
        %v242 = vpow.pop %v241
        %v243 = vmul.f32 %v234, 1.442695
        %v244 = vpow.pop %v243
        %v245 = vmul.f32 %v235, 1.442695
        %v246 = vpow.pop %v245
        %v247 = vmul.f32 %v236, 1.442695
        %v248 = vpow.pop %v247
        %v249 = vmul.f32 %v237, 1.442695
        %v250 = vpow.pop %v249
        %v251 = vmul.f32 %v238, 1.442695
        %v252 = vpow.pop %v251
        %v253 = vmul.f32 %v239, 1.442695
        %v254 = vpow.pop %v253
        %v255 = vmul.f32 %v240, 1.442695
        %v256 = vpow.pop %v255
        %v257 = vsel %vm218, %v242, 0.0
        %v258 = vsel %vm218, %v246, 0.0
        %v259 = vadd.f32 %v257, %v258
        %v260 = vsel %vm218, %v250, 0.0
        %v261 = vadd.f32 %v259, %v260
        %v262 = vsel %vm218, %v254, 0.0
        %v263 = vadd.f32 %v261, %v262
        %v264 = vsel %vm218, %v244, 0.0
        %v265 = vsel %vm218, %v248, 0.0
        %v266 = vadd.f32 %v264, %v265
        %v267 = vsel %vm218, %v252, 0.0
        %v268 = vadd.f32 %v266, %v267
        %v269 = vsel %vm218, %v256, 0.0
        %v270 = vadd.f32 %v268, %v269
        %v271 = vlog2.pop %v263
        %v272 = vmul.f32 %v271, 0.6931472
        %v273 = vlog2.pop %v270
        %v274 = vmul.f32 %v273, 0.6931472
        %v275 = vadd.f32 %v225, %v272
        %v276 = vadd.f32 %v232, %v274
        %vm277 = vcmp.eq.s32.totalorder %v216, 0
        %vm278 = vcmp.eq.s32.totalorder %v217, 0
        %vm279 = vcmp.eq.s32.totalorder %v216, 1
        %vm280 = vcmp.eq.s32.totalorder %v217, 1
        %vm281 = vcmp.eq.s32.totalorder %v216, 2
        %vm282 = vcmp.eq.s32.totalorder %v217, 2
        %vm283 = vcmp.eq.s32.totalorder %v216, 3
        %vm284 = vcmp.eq.s32.totalorder %v217, 3
        %v285 = vsel %vm277, %v204, 0.0
        %v286 = vsel %vm278, %v205, 0.0
        %v287 = vsel %vm279, %v206, 0.0
        %v288 = vsel %vm280, %v207, 0.0
        %v289 = vsel %vm281, %v208, 0.0
        %v290 = vsel %vm282, %v209, 0.0
        %v291 = vsel %vm283, %v210, 0.0
        %v292 = vsel %vm284, %v211, 0.0
        %v293 = vsel %vm218, %v285, 0.0
        %v294 = vsel %vm218, %v287, 0.0
        %v295 = vadd.f32 %v293, %v294
        %v296 = vsel %vm218, %v289, 0.0
        %v297 = vadd.f32 %v295, %v296
        %v298 = vsel %vm218, %v291, 0.0
        %v299 = vadd.f32 %v297, %v298
        %v300 = vsel %vm218, %v286, 0.0
        %v301 = vsel %vm218, %v288, 0.0
        %v302 = vadd.f32 %v300, %v301
        %v303 = vsel %vm218, %v290, 0.0
        %v304 = vadd.f32 %v302, %v303
        %v305 = vsel %vm218, %v292, 0.0
        %v306 = vadd.f32 %v304, %v305
        %v307 = vsub.f32 %v275, %v299
        %v308 = vsub.f32 %v276, %v306
        %v309 = vsel %vm214, 0.0, %v307
        %v310 = vsel %vm215, 0.0, %v308
        %vm311 = vcmp.eq.f32.partialorder %v204, %v225
        %vm312 = vcmp.eq.f32.partialorder %v205, %v232
        %vm313 = vcmp.eq.f32.partialorder %v206, %v225
        %vm314 = vcmp.eq.f32.partialorder %v207, %v232
        %vm315 = vcmp.eq.f32.partialorder %v208, %v225
        %vm316 = vcmp.eq.f32.partialorder %v209, %v232
        %vm317 = vcmp.eq.f32.partialorder %v210, %v225
        %vm318 = vcmp.eq.f32.partialorder %v211, %v232
        %v319 = vsel %vm311, 0, 4
        %v320 = vsel %vm312, 0, 4
        %v321 = vsel %vm313, 1, 4
        %v322 = vsel %vm314, 1, 4
        %v323 = vsel %vm315, 2, 4
        %v324 = vsel %vm316, 2, 4
        %v325 = vsel %vm317, 3, 4
        %v326 = vsel %vm318, 3, 4
        %v327 = vsel %vm218, %v319, 2147483647
        %v328 = vsel %vm218, %v321, 2147483647
        %v329 = vsel %vm218, %v323, 2147483647
        %vm330 = vcmp.lt.s32.totalorder %v327, %v329
        %v331 = vsel %vm330, %v327, %v329
        %v332 = vsel %vm218, %v325, 2147483647
        %vm333 = vcmp.lt.s32.totalorder %v328, %v332
        %v334 = vsel %vm333, %v328, %v332
        %vm335 = vcmp.lt.s32.totalorder %v331, %v334
        %v336 = vsel %vm335, %v331, %v334
        %v337 = vsel %vm218, %v320, 2147483647
        %v338 = vsel %vm218, %v322, 2147483647
        %v339 = vsel %vm218, %v324, 2147483647
        %vm340 = vcmp.lt.s32.totalorder %v337, %v339
        %v341 = vsel %vm340, %v337, %v339
        %v342 = vsel %vm218, %v326, 2147483647
        %vm343 = vcmp.lt.s32.totalorder %v338, %v342
        %v344 = vsel %vm343, %v338, %v342
        %vm345 = vcmp.lt.s32.totalorder %v341, %v344
        %v346 = vsel %vm345, %v341, %v344
        %v347 = vsel %vm214, 0, %v336
        %v348 = vsel %vm215, 0, %v346
        %vm349 = vcmp.ne.s32.totalorder %v216, %v347
        %vm350 = vcmp.ne.s32.totalorder %v217, %v348
        %v351 = vlaneseq
        %v352 = vand.u32 %v351, 127
        %v353 = vlaneseq
        %v354 = vshrl.u32 %v353, 7
        %v355 = vadd.s32 %v354, 8
        %vm356 = vcmp.gt.s32.totalorder %v352, 0
        %vm357 = vcmp.lt.s32.totalorder %v352, 15
        %vm358 = vmand %vm356, %vm357
        %vm359 = vcmp.gt.s32.totalorder %v354, 0
        %vm360 = vcmp.gt.s32.totalorder %v355, 0
        %vm361 = vcmp.lt.s32.totalorder %v354, 15
        %vm362 = vcmp.lt.s32.totalorder %v355, 15
        %vm363 = vmand %vm359, %vm361
        %vm364 = vmand %vm360, %vm362
        %vm365 = vcmask 1047680
        %366 = vrot.lane.b32.xlu0 %v216, 16
        %v367 = vpop.permute.xlu0 %366
        %v368 = vsel %vm365, %v367, %v216
        %369 = vrot.lane.b32.xlu0 %v217, 16
        %v370 = vpop.permute.xlu0 %369
        %v371 = vsel %vm365, %v370, %v217
        %372 = vrot.lane.b32.xlu0 %v368, 16
        %v373 = vpop.permute.xlu0 %372
        %374 = vrot.lane.b32.xlu0 %v371, 16
        %v375 = vpop.permute.xlu0 %374
        %v376 = vsel %vm365, %v373, %v216
        %v377 = vsel %vm365, %v375, %v217
        %378 = vrot.lane.b32.xlu0 %v376, 113
        %v379 = vpop.permute.xlu0 %378
        %380 = vrot.lane.b32.xlu0 %v377, 113
        %v381 = vpop.permute.xlu0 %380
        %vm382 = vcmp.ne.s32.totalorder %v216, %v379
        %vm383 = vcmp.ne.s32.totalorder %v217, %v381
        %384 = vrot.lane.b32.xlu0 %v376, 127
        %v385 = vpop.permute.xlu0 %384
        %386 = vrot.lane.b32.xlu0 %v377, 127
        %v387 = vpop.permute.xlu0 %386
        %vm388 = vcmp.ne.s32.totalorder %v216, %v385
        %vm389 = vcmp.ne.s32.totalorder %v217, %v387
        %vm390 = vmor %vm382, %vm388
        %vm391 = vmor %vm383, %vm389
        %vm392 = vmand %vm390, %vm358
        %vm393 = vmand %vm391, %vm358
        %v394 = vrot.slane %v216, 7
        %v395 = vrot.slane %v217, 7
        %vm396 = vcmp.lt.s32.totalorder %v354, 1
        %v397 = vsel %vm396, %v394, %v395
        %v398 = vsel %vm396, %v395, %v394
        %vm399 = vcmp.ne.s32.totalorder %v216, %v398
        %vm400 = vcmp.ne.s32.totalorder %v217, %v397
        %v401 = vrot.slane %v216, 1
        %v402 = vrot.slane %v217, 1
        %vm403 = vcmp.lt.s32.totalorder %v354, 7
        %v404 = vsel %vm403, %v401, %v402
        %v405 = vsel %vm403, %v402, %v401
        %vm406 = vcmp.ne.s32.totalorder %v216, %v404
        %vm407 = vcmp.ne.s32.totalorder %v217, %v405
        %vm408 = vmor %vm399, %vm406
        %vm409 = vmor %vm400, %vm407
        %vm410 = vmand %vm408, %vm363
        %vm411 = vmand %vm409, %vm364
        %vm412 = vmor %vm392, %vm410
        %vm413 = vmor %vm393, %vm411
        %vm414 = vmor %vm412, %vm349
        %vm415 = vmor %vm413, %vm350
        %v416 = vsel %vm414, 0.0, 1000000.0
        %v417 = vsel %vm415, 0.0, 1000000.0
        %418 = vrot.lane.b32.xlu0 %v416, 16
        %v419 = vpop.permute.xlu0 %418
        %v420 = vsel %vm365, %v419, %v416
        %421 = vrot.lane.b32.xlu0 %v417, 16
        %v422 = vpop.permute.xlu0 %421
        %v423 = vsel %vm365, %v422, %v417
        %424 = vrot.lane.b32.xlu0 %v420, 16
        %v425 = vpop.permute.xlu0 %424
        %426 = vrot.lane.b32.xlu0 %v423, 16
        %v427 = vpop.permute.xlu0 %426
        %v428 = vsel %vm365, %v425, %v416
        %v429 = vsel %vm365, %v427, %v417
        %v430 = vadd.f32 %v428, 1.0
        %v431 = vadd.f32 %v429, 1.0
        %vm432 = vcmp.ge.s32.totalorder %v352, 1
        %435 = vrot.lane.b32.xlu0 %v430, 113
        %v436 = vpop.permute.xlu0 %435
        %437 = vrot.lane.b32.xlu0 %v431, 113
        %v438 = vpop.permute.xlu0 %437
        %v441 = vmin.f32 %v416, %v436
        %v442 = vmin.f32 %v417, %v438
        %v443 = vsel %vm432, %v441, %v416
        %v444 = vsel %vm432, %v442, %v417
        %445 = vrot.lane.b32.xlu0 %v443, 16
        %v446 = vpop.permute.xlu0 %445
        %v447 = vsel %vm365, %v446, %v443
        %448 = vrot.lane.b32.xlu0 %v444, 16
        %v449 = vpop.permute.xlu0 %448
        %v450 = vsel %vm365, %v449, %v444
        %451 = vrot.lane.b32.xlu0 %v447, 16
        %v452 = vpop.permute.xlu0 %451
        %453 = vrot.lane.b32.xlu0 %v450, 16
        %v454 = vpop.permute.xlu0 %453
        %v455 = vsel %vm365, %v452, %v443
        %v456 = vsel %vm365, %v454, %v444
        %v457 = vadd.f32 %v455, 2.0
        %v458 = vadd.f32 %v456, 2.0
        %vm459 = vcmp.ge.s32.totalorder %v352, 2
        %462 = vrot.lane.b32.xlu0 %v457, 114
        %v463 = vpop.permute.xlu0 %462
        %464 = vrot.lane.b32.xlu0 %v458, 114
        %v465 = vpop.permute.xlu0 %464
        %v468 = vmin.f32 %v443, %v463
        %v469 = vmin.f32 %v444, %v465
        %v470 = vsel %vm459, %v468, %v443
        %v471 = vsel %vm459, %v469, %v444
        %472 = vrot.lane.b32.xlu0 %v470, 16
        %v473 = vpop.permute.xlu0 %472
        %v474 = vsel %vm365, %v473, %v470
        %475 = vrot.lane.b32.xlu0 %v471, 16
        %v476 = vpop.permute.xlu0 %475
        %v477 = vsel %vm365, %v476, %v471
        %478 = vrot.lane.b32.xlu0 %v474, 16
        %v479 = vpop.permute.xlu0 %478
        %480 = vrot.lane.b32.xlu0 %v477, 16
        %v481 = vpop.permute.xlu0 %480
        %v482 = vsel %vm365, %v479, %v470
        %v483 = vsel %vm365, %v481, %v471
        %v484 = vadd.f32 %v482, 4.0
        %v485 = vadd.f32 %v483, 4.0
        %vm486 = vcmp.ge.s32.totalorder %v352, 4
        %489 = vrot.lane.b32.xlu0 %v484, 116
        %v490 = vpop.permute.xlu0 %489
        %491 = vrot.lane.b32.xlu0 %v485, 116
        %v492 = vpop.permute.xlu0 %491
        %v495 = vmin.f32 %v470, %v490
        %v496 = vmin.f32 %v471, %v492
        %v497 = vsel %vm486, %v495, %v470
        %v498 = vsel %vm486, %v496, %v471
        %499 = vrot.lane.b32.xlu0 %v497, 16
        %v500 = vpop.permute.xlu0 %499
        %v501 = vsel %vm365, %v500, %v497
        %502 = vrot.lane.b32.xlu0 %v498, 16
        %v503 = vpop.permute.xlu0 %502
        %v504 = vsel %vm365, %v503, %v498
        %505 = vrot.lane.b32.xlu0 %v501, 16
        %v506 = vpop.permute.xlu0 %505
        %507 = vrot.lane.b32.xlu0 %v504, 16
        %v508 = vpop.permute.xlu0 %507
        %v509 = vsel %vm365, %v506, %v497
        %v510 = vsel %vm365, %v508, %v498
        %v511 = vadd.f32 %v509, 8.0
        %v512 = vadd.f32 %v510, 8.0
        %vm513 = vcmp.ge.s32.totalorder %v352, 8
        %516 = vrot.lane.b32.xlu0 %v511, 120
        %v517 = vpop.permute.xlu0 %516
        %518 = vrot.lane.b32.xlu0 %v512, 120
        %v519 = vpop.permute.xlu0 %518
        %v522 = vmin.f32 %v497, %v517
        %v523 = vmin.f32 %v498, %v519
        %v524 = vsel %vm513, %v522, %v497
        %v525 = vsel %vm513, %v523, %v498
        %526 = vrot.lane.b32.xlu0 %v430, 127
        %v527 = vpop.permute.xlu0 %526
        %528 = vrot.lane.b32.xlu0 %v431, 127
        %v529 = vpop.permute.xlu0 %528
        %v532 = vmin.f32 %v416, %v527
        %v533 = vmin.f32 %v417, %v529
        %v534 = vsel %vm357, %v532, %v416
        %v535 = vsel %vm357, %v533, %v417
        %536 = vrot.lane.b32.xlu0 %v534, 16
        %v537 = vpop.permute.xlu0 %536
        %v538 = vsel %vm365, %v537, %v534
        %539 = vrot.lane.b32.xlu0 %v535, 16
        %v540 = vpop.permute.xlu0 %539
        %v541 = vsel %vm365, %v540, %v535
        %542 = vrot.lane.b32.xlu0 %v538, 16
        %v543 = vpop.permute.xlu0 %542
        %544 = vrot.lane.b32.xlu0 %v541, 16
        %v545 = vpop.permute.xlu0 %544
        %v546 = vsel %vm365, %v543, %v534
        %v547 = vsel %vm365, %v545, %v535
        %v548 = vadd.f32 %v546, 2.0
        %v549 = vadd.f32 %v547, 2.0
        %vm550 = vcmp.lt.s32.totalorder %v352, 14
        %553 = vrot.lane.b32.xlu0 %v548, 126
        %v554 = vpop.permute.xlu0 %553
        %555 = vrot.lane.b32.xlu0 %v549, 126
        %v556 = vpop.permute.xlu0 %555
        %v559 = vmin.f32 %v534, %v554
        %v560 = vmin.f32 %v535, %v556
        %v561 = vsel %vm550, %v559, %v534
        %v562 = vsel %vm550, %v560, %v535
        %563 = vrot.lane.b32.xlu0 %v561, 16
        %v564 = vpop.permute.xlu0 %563
        %v565 = vsel %vm365, %v564, %v561
        %566 = vrot.lane.b32.xlu0 %v562, 16
        %v567 = vpop.permute.xlu0 %566
        %v568 = vsel %vm365, %v567, %v562
        %569 = vrot.lane.b32.xlu0 %v565, 16
        %v570 = vpop.permute.xlu0 %569
        %571 = vrot.lane.b32.xlu0 %v568, 16
        %v572 = vpop.permute.xlu0 %571
        %v573 = vsel %vm365, %v570, %v561
        %v574 = vsel %vm365, %v572, %v562
        %v575 = vadd.f32 %v573, 4.0
        %v576 = vadd.f32 %v574, 4.0
        %vm577 = vcmp.lt.s32.totalorder %v352, 12
        %580 = vrot.lane.b32.xlu0 %v575, 124
        %v581 = vpop.permute.xlu0 %580
        %582 = vrot.lane.b32.xlu0 %v576, 124
        %v583 = vpop.permute.xlu0 %582
        %v586 = vmin.f32 %v561, %v581
        %v587 = vmin.f32 %v562, %v583
        %v588 = vsel %vm577, %v586, %v561
        %v589 = vsel %vm577, %v587, %v562
        %590 = vrot.lane.b32.xlu0 %v588, 16
        %v591 = vpop.permute.xlu0 %590
        %v592 = vsel %vm365, %v591, %v588
        %593 = vrot.lane.b32.xlu0 %v589, 16
        %v594 = vpop.permute.xlu0 %593
        %v595 = vsel %vm365, %v594, %v589
        %596 = vrot.lane.b32.xlu0 %v592, 16
        %v597 = vpop.permute.xlu0 %596
        %598 = vrot.lane.b32.xlu0 %v595, 16
        %v599 = vpop.permute.xlu0 %598
        %v600 = vsel %vm365, %v597, %v588
        %v601 = vsel %vm365, %v599, %v589
        %v602 = vadd.f32 %v600, 8.0
        %v603 = vadd.f32 %v601, 8.0
        %vm604 = vcmp.lt.s32.totalorder %v352, 8
        %607 = vrot.lane.b32.xlu0 %v602, 120
        %v608 = vpop.permute.xlu0 %607
        %609 = vrot.lane.b32.xlu0 %v603, 120
        %v610 = vpop.permute.xlu0 %609
        %v613 = vmin.f32 %v588, %v608
        %v614 = vmin.f32 %v589, %v610
        %v615 = vsel %vm604, %v613, %v588
        %v616 = vsel %vm604, %v614, %v589
        %v617 = vmin.f32 %v524, %v615
        %v618 = vmin.f32 %v525, %v616
        %v619 = vmul.f32 %v617, %v617
        %v620 = vmul.f32 %v618, %v618
        %v621 = vcvt.s32.f32 %v354
        %v622 = vcvt.s32.f32 %v355
        %v623 = vmul.f32 %v621, %v621
        %v624 = vmul.f32 %v622, %v622
        %v625 = vperm.slane %v619, 0
        %v626 = vadd.f32 %v625, %v623
        %v627 = vadd.f32 %v625, %v624
        %v628 = vmin.f32 %v626, 1e+09
        %v629 = vmin.f32 %v627, 1e+09
        %v630 = vrot.slane %v619, 1
        %v631 = vrot.slane %v620, 1
        %v632 = vsel %vm403, %v630, %v631
        %v633 = vsel %vm403, %v631, %v630
        %v634 = vsub.f32 %v621, 1.0
        %v635 = vsub.f32 %v622, 1.0
        %v636 = vmul.f32 %v634, %v634
        %v637 = vmul.f32 %v635, %v635
        %v638 = vperm.slane %v632, 0
        %v639 = vadd.f32 %v638, %v636
        %v640 = vadd.f32 %v638, %v637
        %v641 = vmin.f32 %v628, %v639
        %v642 = vmin.f32 %v629, %v640
        %v643 = vrot.slane %v632, 1
        %v644 = vrot.slane %v633, 1
        %v645 = vsel %vm403, %v643, %v644
        %v646 = vsel %vm403, %v644, %v643
        %v647 = vsub.f32 %v621, 2.0
        %v648 = vsub.f32 %v622, 2.0
        %v649 = vmul.f32 %v647, %v647
        %v650 = vmul.f32 %v648, %v648
        %v651 = vperm.slane %v645, 0
        %v652 = vadd.f32 %v651, %v649
        %v653 = vadd.f32 %v651, %v650
        %v654 = vmin.f32 %v641, %v652
        %v655 = vmin.f32 %v642, %v653
        %v656 = vrot.slane %v645, 1
        %v657 = vrot.slane %v646, 1
        %v658 = vsel %vm403, %v656, %v657
        %v659 = vsel %vm403, %v657, %v656
        %v660 = vsub.f32 %v621, 3.0
        %v661 = vsub.f32 %v622, 3.0
        %v662 = vmul.f32 %v660, %v660
        %v663 = vmul.f32 %v661, %v661
        %v664 = vperm.slane %v658, 0
        %v665 = vadd.f32 %v664, %v662
        %v666 = vadd.f32 %v664, %v663
        %v667 = vmin.f32 %v654, %v665
        %v668 = vmin.f32 %v655, %v666
        %v669 = vrot.slane %v658, 1
        %v670 = vrot.slane %v659, 1
        %v671 = vsel %vm403, %v669, %v670
        %v672 = vsel %vm403, %v670, %v669
        %v673 = vsub.f32 %v621, 4.0
        %v674 = vsub.f32 %v622, 4.0
        %v675 = vmul.f32 %v673, %v673
        %v676 = vmul.f32 %v674, %v674
        %v677 = vperm.slane %v671, 0
        %v678 = vadd.f32 %v677, %v675
        %v679 = vadd.f32 %v677, %v676
        %v680 = vmin.f32 %v667, %v678
        %v681 = vmin.f32 %v668, %v679
        %v682 = vrot.slane %v671, 1
        %v683 = vrot.slane %v672, 1
        %v684 = vsel %vm403, %v682, %v683
        %v685 = vsel %vm403, %v683, %v682
        %v686 = vsub.f32 %v621, 5.0
        %v687 = vsub.f32 %v622, 5.0
        %v688 = vmul.f32 %v686, %v686
        %v689 = vmul.f32 %v687, %v687
        %v690 = vperm.slane %v684, 0
        %v691 = vadd.f32 %v690, %v688
        %v692 = vadd.f32 %v690, %v689
        %v693 = vmin.f32 %v680, %v691
        %v694 = vmin.f32 %v681, %v692
        %v695 = vrot.slane %v684, 1
        %v696 = vrot.slane %v685, 1
        %v697 = vsel %vm403, %v695, %v696
        %v698 = vsel %vm403, %v696, %v695
        %v699 = vsub.f32 %v621, 6.0
        %v700 = vsub.f32 %v622, 6.0
        %v701 = vmul.f32 %v699, %v699
        %v702 = vmul.f32 %v700, %v700
        %v703 = vperm.slane %v697, 0
        %v704 = vadd.f32 %v703, %v701
        %v705 = vadd.f32 %v703, %v702
        %v706 = vmin.f32 %v693, %v704
        %v707 = vmin.f32 %v694, %v705
        %v708 = vrot.slane %v697, 1
        %v709 = vrot.slane %v698, 1
        %v710 = vsel %vm403, %v708, %v709
        %v711 = vsel %vm403, %v709, %v708
        %v712 = vsub.f32 %v621, 7.0
        %v713 = vsub.f32 %v622, 7.0
        %v714 = vmul.f32 %v712, %v712
        %v715 = vmul.f32 %v713, %v713
        %v716 = vperm.slane %v710, 0
        %v717 = vadd.f32 %v716, %v714
        %v718 = vadd.f32 %v716, %v715
        %v719 = vmin.f32 %v706, %v717
        %v720 = vmin.f32 %v707, %v718
        %v721 = vrot.slane %v710, 1
        %v722 = vrot.slane %v711, 1
        %v723 = vsel %vm403, %v721, %v722
        %v724 = vsel %vm403, %v722, %v721
        %v725 = vsub.f32 %v621, 8.0
        %v726 = vsub.f32 %v622, 8.0
        %v727 = vmul.f32 %v725, %v725
        %v728 = vmul.f32 %v726, %v726
        %v729 = vperm.slane %v723, 0
        %v730 = vadd.f32 %v729, %v727
        %v731 = vadd.f32 %v729, %v728
        %v732 = vmin.f32 %v719, %v730
        %v733 = vmin.f32 %v720, %v731
        %v734 = vrot.slane %v723, 1
        %v735 = vrot.slane %v724, 1
        %v736 = vsel %vm403, %v734, %v735
        %v737 = vsel %vm403, %v735, %v734
        %v738 = vsub.f32 %v621, 9.0
        %v739 = vsub.f32 %v622, 9.0
        %v740 = vmul.f32 %v738, %v738
        %v741 = vmul.f32 %v739, %v739
        %v742 = vperm.slane %v736, 0
        %v743 = vadd.f32 %v742, %v740
        %v744 = vadd.f32 %v742, %v741
        %v745 = vmin.f32 %v732, %v743
        %v746 = vmin.f32 %v733, %v744
        %v747 = vrot.slane %v736, 1
        %v748 = vrot.slane %v737, 1
        %v749 = vsel %vm403, %v747, %v748
        %v750 = vsel %vm403, %v748, %v747
        %v751 = vsub.f32 %v621, 10.0
        %v752 = vsub.f32 %v622, 10.0
        %v753 = vmul.f32 %v751, %v751
        %v754 = vmul.f32 %v752, %v752
        %v755 = vperm.slane %v749, 0
        %v756 = vadd.f32 %v755, %v753
        %v757 = vadd.f32 %v755, %v754
        %v758 = vmin.f32 %v745, %v756
        %v759 = vmin.f32 %v746, %v757
        %v760 = vrot.slane %v749, 1
        %v761 = vrot.slane %v750, 1
        %v762 = vsel %vm403, %v760, %v761
        %v763 = vsel %vm403, %v761, %v760
        %v764 = vsub.f32 %v621, 11.0
        %v765 = vsub.f32 %v622, 11.0
        %v766 = vmul.f32 %v764, %v764
        %v767 = vmul.f32 %v765, %v765
        %v768 = vperm.slane %v762, 0
        %v769 = vadd.f32 %v768, %v766
        %v770 = vadd.f32 %v768, %v767
        %v771 = vmin.f32 %v758, %v769
        %v772 = vmin.f32 %v759, %v770
        %v773 = vrot.slane %v762, 1
        %v774 = vrot.slane %v763, 1
        %v775 = vsel %vm403, %v773, %v774
        %v776 = vsel %vm403, %v774, %v773
        %v777 = vsub.f32 %v621, 12.0
        %v778 = vsub.f32 %v622, 12.0
        %v779 = vmul.f32 %v777, %v777
        %v780 = vmul.f32 %v778, %v778
        %v781 = vperm.slane %v775, 0
        %v782 = vadd.f32 %v781, %v779
        %v783 = vadd.f32 %v781, %v780
        %v784 = vmin.f32 %v771, %v782
        %v785 = vmin.f32 %v772, %v783
        %v786 = vrot.slane %v775, 1
        %v787 = vrot.slane %v776, 1
        %v788 = vsel %vm403, %v786, %v787
        %v789 = vsel %vm403, %v787, %v786
        %v790 = vsub.f32 %v621, 13.0
        %v791 = vsub.f32 %v622, 13.0
        %v792 = vmul.f32 %v790, %v790
        %v793 = vmul.f32 %v791, %v791
        %v794 = vperm.slane %v788, 0
        %v795 = vadd.f32 %v794, %v792
        %v796 = vadd.f32 %v794, %v793
        %v797 = vmin.f32 %v784, %v795
        %v798 = vmin.f32 %v785, %v796
        %v799 = vrot.slane %v788, 1
        %v800 = vrot.slane %v789, 1
        %v801 = vsel %vm403, %v799, %v800
        %v802 = vsel %vm403, %v800, %v799
        %v803 = vsub.f32 %v621, 14.0
        %v804 = vsub.f32 %v622, 14.0
        %v805 = vmul.f32 %v803, %v803
        %v806 = vmul.f32 %v804, %v804
        %v807 = vperm.slane %v801, 0
        %v808 = vadd.f32 %v807, %v805
        %v809 = vadd.f32 %v807, %v806
        %v810 = vmin.f32 %v797, %v808
        %v811 = vmin.f32 %v798, %v809
        %v812 = vrot.slane %v801, 1
        %v813 = vrot.slane %v802, 1
        %v814 = vsel %vm403, %v812, %v813
        %v815 = vsub.f32 %v621, 15.0
        %v816 = vsub.f32 %v622, 15.0
        %v817 = vmul.f32 %v815, %v815
        %v818 = vmul.f32 %v816, %v816
        %v819 = vperm.slane %v814, 0
        %v820 = vadd.f32 %v819, %v817
        %v821 = vadd.f32 %v819, %v818
        %v822 = vmin.f32 %v810, %v820
        %v823 = vmin.f32 %v811, %v821
        %v824 = vmul.f32 %v822, -0.010204081
        %v825 = vmul.f32 %v823, -0.010204081
        %v826 = vmul.f32 %v824, 1.442695
        %v827 = vpow.pop %v826
        %v828 = vmul.f32 %v825, 1.442695
        %v829 = vpow.pop %v828
        %v830 = vadd.f32 %v827, 1.0
        %v831 = vadd.f32 %v829, 1.0
        %v832 = vsel %vm214, 0.0, %v830
        %v833 = vsel %vm215, 0.0, %v831
        %v834 = vmul.f32 %v309, %v832
        %v835 = vmul.f32 %v310, %v833
        %v836 = vsel %vm218, %v834, 0.0
        %837 = vadd.xlane.f32.xlu0 %v836
        %v838 = vpop.xlane.xlu0 %837
        %v839 = vsel %vm218, %v835, 0.0
        %840 = vadd.xlane.f32.xlu0 %v839
        %v841 = vpop.xlane.xlu0 %840
        %v842 = vadd.f32 %v838, %v841
        %v843 = vrot.slane %v842, 4
        %v844 = vadd.f32 %v842, %v843
        %v845 = vrot.slane %v844, 2
        %v846 = vadd.f32 %v844, %v845
        %v847 = vrot.slane %v846, 1
        %v848 = vadd.f32 %v846, %v847
        %v849 = vsel %vm218, %v832, 0.0
        %850 = vadd.xlane.f32.xlu0 %v849
        %v851 = vpop.xlane.xlu0 %850
        %v852 = vsel %vm218, %v833, 0.0
        %853 = vadd.xlane.f32.xlu0 %v852
        %v854 = vpop.xlane.xlu0 %853
        %v855 = vadd.f32 %v851, %v854
        %v856 = vrot.slane %v855, 4
        %v857 = vadd.f32 %v855, %v856
        %v858 = vrot.slane %v857, 2
        %v859 = vadd.f32 %v857, %v858
        %v860 = vrot.slane %v859, 1
        %v861 = vadd.f32 %v859, %v860
        %v862 = vadd.f32 %v861, 1e-10
        %v863 = vrcp.pop %v862
        %v864 = vmul.f32 %v862, %v863
        %v865 = vsub.f32 1.0, %v864
        %v866 = vmul.f32 %v863, %v865
        %v867 = vadd.f32 %v863, %v866
        %vm868 = vweird.f32 %v862
        %vm869 = vweird.f32 %v863
        %vm870 = vmor %vm868, %vm869
        %v871 = vsel %vm870, %v863, %v867
        %v872 = vand.u32 2147483647, %v862
        %vm873 = vcmp.eq.f32.partialorder %v872, 8.507059e+37
        %v874 = vand.u32 %v862, 2147483648
        %v875 = vor.u32 1.1754944e-38, %v874
        %v876 = vsel %vm873, %v875, %v871
        %v877 = vmul.f32 %v848, %v876
        %vm878 = vcmask 0
        %879 = vst.msk [vmem:[%s203] sm:$0x1] %vm878, %v877
        %p880 = scmp.lt.s32.totalorder %s19, 1
        %s881 = scalar_select %p880, %s19, 1
        %s882 = scalar_lea.vmem %s2, %s881
        // Predicated region
        $region37: #{tpu_custom_call.1} parent=27 // pred_check
          %p883 = pneg %p89
        $region38: #{tpu_custom_call.1} parent=27 // pred_check_branch
          %885 = sbr.rel (%p883) target = $region40
        $region39: #{tpu_custom_call.1} parent=27 // pred_region
          _
        $region40: #{tpu_custom_call.1} parent=27 // pred_fallthru
          _
      $region28: #{tpu_custom_call.1} parent=5 // pred_fallthru
        _
      %p886 = scmp.le.s32.totalorder 2, %s14
      // Predicated region
      $region41: #{tpu_custom_call.1} parent=5 // pred_check
        %p887 = pneg %p886
      $region42: #{tpu_custom_call.1} parent=5 // pred_check_branch
        %889 = sbr.rel (%p887) target = $region44
      $region43: #{tpu_custom_call.1} parent=5 // pred_region
        %s890 = ssub.s32 %s14, 2
        // Predicated region
        $region45: #{tpu_custom_call.1} parent=43 // pred_check
          %p891 = pneg %p95
        $region46: #{tpu_custom_call.1} parent=43 // pred_check_branch
          %893 = sbr.rel (%p891) target = $region48
        $region47: #{tpu_custom_call.1} parent=43 // pred_region
          %p894 = scmp.lt.s32.totalorder %s20, 1
          %s895 = scalar_select %p894, %s20, 1
          %s896 = scalar_lea.vmem %s2, %s895
        $region48: #{tpu_custom_call.1} parent=43 // pred_fallthru
          _
      $region44: #{tpu_custom_call.1} parent=5 // pred_fallthru
        _
    $region6: #{tpu_custom_call.1} parent=1 // loop_footer
      %s18 = sadd.s32 1, %s14
    $region7: #{tpu_custom_call.1} parent=1 // loop_footer_branch
      %13 = sbr.rel target = $region3
    $region8: #{tpu_custom_call.1} parent=1 // loop_exit
      _
    %897 = vsyncpa [#allocation3], 1
    %s898 = scalar_lea.sflag [#allocation3], 1
    %899 = vsyncpa %s898, 1
    %900 = vsyncpa [#allocation5], 1
    %s901 = scalar_lea.sflag [#allocation5], 1
    %902 = vsyncpa %s901, 1

</llo_original>
